<compile_context>
chip_gen: v6e
topology: v6e:2x2x1
jax: 0.10.0
libtpu: 0.0.40
codegen_flags: <defaults>
</compile_context>

<pallas_src>
import functools

import jax
import jax.numpy as jnp
from jax.experimental import pallas as pl
from jax.experimental.pallas import tpu as pltpu

LANES = 128
SUBLANES = 8
MAX_TILE_ROWS = 1024   # sweet spot per measured roofline data; 3 inputs x
                       # 2 buffers x 512 KiB = 3 MiB VMEM, fine on all chips.
NUM_CORES = 2          # v7x has 2 TensorCores; harmless size-2 loop elsewhere.


def _cdiv(a, b):
    return (a + b - 1) // b


def _round_up(a, b):
    return _cdiv(a, b) * b


def _depth_uncer_loss_kernel(d1_ref, d2_ref, u_ref, out_ref, *,
                             min_disp, max_disp, n_valid, tile_r, grid_r,
                             full_blocks, has_pad, flip):
    c = pl.program_id(0)   # core-split axis ("parallel")
    j = pl.program_id(1)   # reduction axis ("arbitrary")

    @pl.when(j == 0)
    def _():
        out_ref[...] = jnp.zeros_like(out_ref)

    d1 = d1_ref[...].astype(jnp.float32)
    d2 = d2_ref[...].astype(jnp.float32)
    u = u_ref[...].astype(jnp.float32)

    # disp -> depth (monodepth-style disp_to_uniform_depth).
    depth = pl.reciprocal(min_disp + (max_disp - min_disp) * d1, approx=False)
    if flip:
        # 'flip' branch: d_2 is also a disparity map -> convert it too.
        target = pl.reciprocal(min_disp + (max_disp - min_disp) * d2,
                               approx=False)
    else:
        # 'origin' branch: d_2 used directly.
        target = d2

    diff = jnp.abs(depth - target)
    loss = jnp.abs(u - 1.0 + jnp.exp(-diff)) + diff * (1.0 - u)

    def accumulate(vals):
        # (tile_r, 128) -> (tile_r//8, 8, 128), sum leading axis: pure VPU adds
        # into the resident (8, 128) accumulator (the output block itself).
        out_ref[...] += vals.reshape(tile_r // SUBLANES, SUBLANES, LANES).sum(axis=0)

    if has_pad:
        b = c * grid_r + j            # global block index (row offset b*tile_r)

        @pl.when(b < full_blocks)     # block is entirely valid: no mask work
        def _():
            accumulate(loss)

        @pl.when(b >= full_blocks)    # block may contain zero-padding: mask it
        def _():
            row = jax.lax.broadcasted_iota(jnp.int32, loss.shape, 0) + b * tile_r
            col = jax.lax.broadcasted_iota(jnp.int32, loss.shape, 1)
            flat = row * LANES + col
            accumulate(jnp.where(flat < n_valid, loss, 0.0))
    else:
        accumulate(loss)


def depth_uncer_loss(d_1, d_2, depth_uncer, *, depth_min, depth_max,
                     beta=0.2, loss_type="origin"):
    """Pallas implementation of DepthUncerLoss.forward. Returns a scalar."""
    del beta  # unused in the reference forward pass
    if loss_type not in ("origin", "flip"):
        raise TypeError(loss_type)

    n_valid = int(d_1.size)
    base_rows = max(1, _cdiv(n_valid, LANES))
    # Rows handled per grid step: as large as possible (up to 1024) while
    # keeping the 2-core split from over-padding small inputs.
    tile_r = min(MAX_TILE_ROWS,
                 _round_up(_cdiv(base_rows, NUM_CORES), SUBLANES))
    nblocks = _round_up(_cdiv(base_rows, tile_r), NUM_CORES)
    grid_r = nblocks // NUM_CORES
    rows = nblocks * tile_r
    padded = rows * LANES
    has_pad = padded != n_valid
    full_blocks = n_valid // (tile_r * LANES)   # blocks containing no padding

    def prep(x):
        flat = x.reshape(-1)
        if has_pad:
            # Only the tail is padded; when sizes line up this is a pure
            # reshape and no extra HBM copy is made.
            flat = jnp.pad(flat, (0, padded - n_valid))
        return flat.reshape(rows, LANES)

    d1_p, d2_p, u_p = prep(d_1), prep(d_2), prep(depth_uncer)

    min_disp = 1.0 / float(depth_max)
    max_disp = 1.0 / float(depth_min)

    kernel = functools.partial(
        _depth_uncer_loss_kernel,
        min_disp=min_disp, max_disp=max_disp, n_valid=n_valid,
        tile_r=tile_r, grid_r=grid_r, full_blocks=full_blocks,
        has_pad=has_pad, flip=(loss_type == "flip"))

    in_spec = pl.BlockSpec((tile_r, LANES), lambda c, j, g=grid_r: (c * g + j, 0))
    partials = pl.pallas_call(
        kernel,
        out_shape=jax.ShapeDtypeStruct((NUM_CORES * SUBLANES, LANES),
                                       jnp.float32),
        grid_spec=pltpu.PrefetchScalarGridSpec(
            num_scalar_prefetch=0,
            grid=(NUM_CORES, grid_r),
            in_specs=[in_spec, in_spec, in_spec],
            out_specs=pl.BlockSpec((SUBLANES, LANES), lambda c, j: (c, 0)),
        ),
        compiler_params=pltpu.CompilerParams(
            dimension_semantics=("parallel", "arbitrary")),
    )(d1_p, d2_p, u_p)

    # Single cross-lane/sublane reduction, once, outside the kernel.
    return jnp.sum(partials) / n_valid


def _reference(d_1, d_2, depth_uncer, depth_min, depth_max, loss_type):
    min_disp = 1.0 / depth_max
    max_disp = 1.0 / depth_min
    depth = 1.0 / (min_disp + (max_disp - min_disp) * d_1)
    if loss_type == "flip":
        target = 1.0 / (min_disp + (max_disp - min_disp) * d_2)
    else:
        target = d_2
    diff = jnp.abs(depth - target)
    loss = (jnp.abs(depth_uncer - 1.0 + jnp.exp(-diff))
            + diff * (1.0 - depth_uncer))
    return jnp.mean(loss)


if __name__ == "__main__":
    depth_min, depth_max = 0.1, 100.0

    def make_inputs(key, shape):
        k1, k2, k3 = jax.random.split(key, 3)
        d_1 = jax.random.uniform(k1, shape, jnp.float32, 0.05, 0.95)
        d_2 = jax.random.uniform(k2, shape, jnp.float32, 0.5, 10.0)
        u = jax.random.uniform(k3, shape, jnp.float32, 0.0, 1.0)
        return d_1, d_2, u

    keys = jax.random.split(jax.random.PRNGKey(0), 3)

    # Cases: small NCHW map (padded path, both branches), a lane-aligned size
    # (no-pad / mask-free path), and a ragged size (partially-valid block).
    cases = [
        ((2, 1, 16, 16), "origin", keys[0]),
        ((2, 1, 16, 16), "flip", keys[0]),
        ((2, 1, 8, 128), "origin", keys[1]),
        ((1, 1, 24, 100), "flip", keys[2]),
    ]

    for shape, loss_type, k in cases:
        d_1, d_2, u = make_inputs(k, shape)
        out = jax.block_until_ready(
            depth_uncer_loss(d_1, d_2, u, depth_min=depth_min,
                             depth_max=depth_max, loss_type=loss_type))
        ref = _reference(d_1, d_2, u, depth_min, depth_max, loss_type)
        assert jnp.allclose(out, ref, rtol=1e-5, atol=1e-5), (
            shape, loss_type, out, ref)

    print("KERNEL_OK")
</pallas_src>

<mosaic_0001>
module attributes {stable_mosaic.version = 11 : i64} {
  func.func @_depth_uncer_loss_kernel(%arg0: i32, %arg1: i32, %arg2: memref<8x128xf32, #tpu.memory_space<vmem>>, %arg3: memref<8x128xf32, #tpu.memory_space<vmem>>, %arg4: memref<8x128xf32, #tpu.memory_space<vmem>>, %arg5: memref<8x128xf32, #tpu.memory_space<vmem>>) attributes {dimension_semantics = [#tpu.dimension_semantics<parallel>, #tpu.dimension_semantics<arbitrary>], iteration_bounds = array<i64: 2, 1>, scalar_prefetch = 0 : i64, scratch_operands = 0 : i64, tpu.core_type = #tpu.core_type<tc>, window_params = [{transform_indices = @transform_0, window_bounds = array<i64: 8, 128>}, {transform_indices = @transform_1, window_bounds = array<i64: 8, 128>}, {transform_indices = @transform_2, window_bounds = array<i64: 8, 128>}, {transform_indices = @transform_3, window_bounds = array<i64: 8, 128>}]} {
    %c0_i32 = arith.constant 0 : i32
    %0 = arith.cmpi eq, %arg1, %c0_i32 : i32
    %1 = arith.extui %0 : i1 to i32
    %c0_i32_0 = arith.constant 0 : i32
    %2 = arith.cmpi ne, %1, %c0_i32_0 : i32
    scf.if %2 {
      %cst_14 = arith.constant 0.000000e+00 : f32
      %32 = vector.broadcast %cst_14 : f32 to vector<8x128xf32>
      %c0_15 = arith.constant 0 : index
      %c0_16 = arith.constant 0 : index
      %33 = vector.load %arg5[%c0_15, %c0_16] : memref<8x128xf32, #tpu.memory_space<vmem>>, vector<8x128xf32>
      tpu.vector_store %arg5[%c0_15, %c0_16], %32 {strides = array<i32>} : memref<8x128xf32, #tpu.memory_space<vmem>>, vector<8x128xf32>,
    } else {
    }
    %c0 = arith.constant 0 : index
    %c0_1 = arith.constant 0 : index
    %3 = vector.load %arg2[%c0, %c0_1] : memref<8x128xf32, #tpu.memory_space<vmem>>, vector<8x128xf32>
    %c0_2 = arith.constant 0 : index
    %c0_3 = arith.constant 0 : index
    %4 = vector.load %arg3[%c0_2, %c0_3] : memref<8x128xf32, #tpu.memory_space<vmem>>, vector<8x128xf32>
    %c0_4 = arith.constant 0 : index
    %c0_5 = arith.constant 0 : index
    %5 = vector.load %arg4[%c0_4, %c0_5] : memref<8x128xf32, #tpu.memory_space<vmem>>, vector<8x128xf32>
    %cst = arith.constant 9.98999977 : f32
    %6 = vector.broadcast %cst : f32 to vector<8x128xf32>
    %7 = arith.mulf %6, %3 : vector<8x128xf32>
    %cst_6 = arith.constant 0.00999999977 : f32
    %8 = vector.broadcast %cst_6 : f32 to vector<8x128xf32>
    %9 = arith.addf %8, %7 : vector<8x128xf32>
    %10 = tpu.reciprocal %9 : vector<8x128xf32> -> vector<8x128xf32>
    %11 = arith.subf %10, %4 : vector<8x128xf32>
    %12 = math.absf %11 : vector<8x128xf32>
    %cst_7 = arith.constant 1.000000e+00 : f32
    %13 = vector.broadcast %cst_7 : f32 to vector<8x128xf32>
    %14 = arith.subf %5, %13 : vector<8x128xf32>
    %cst_8 = arith.constant 0.000000e+00 : f32
    %15 = vector.broadcast %cst_8 : f32 to vector<8x128xf32>
    %16 = arith.subf %15, %12 : vector<8x128xf32>
    %17 = math.exp %16 : vector<8x128xf32>
    %18 = arith.addf %14, %17 : vector<8x128xf32>
    %19 = math.absf %18 : vector<8x128xf32>
    %cst_9 = arith.constant 1.000000e+00 : f32
    %20 = vector.broadcast %cst_9 : f32 to vector<8x128xf32>
    %21 = arith.subf %20, %5 : vector<8x128xf32>
    %22 = arith.mulf %12, %21 : vector<8x128xf32>
    %23 = arith.addf %19, %22 : vector<8x128xf32>
    %c1_i32 = arith.constant 1 : i32
    %24 = arith.muli %arg0, %c1_i32 : i32
    %25 = arith.addi %24, %arg1 : i32
    %c0_i32_10 = arith.constant 0 : i32
    %26 = arith.cmpi slt, %25, %c0_i32_10 : i32
    %27 = arith.extui %26 : i1 to i32
    %c0_i32_11 = arith.constant 0 : i32
    %28 = arith.cmpi ne, %27, %c0_i32_11 : i32
    scf.if %28 {
      %c0_14 = arith.constant 0 : index
      %c0_15 = arith.constant 0 : index
      %32 = vector.load %arg5[%c0_14, %c0_15] : memref<8x128xf32, #tpu.memory_space<vmem>>, vector<8x128xf32>
      %33 = vector.shape_cast %23 : vector<8x128xf32> to vector<1x8x128xf32>
      %cst_16 = arith.constant dense<0.000000e+00> : vector<8x128xf32>
      %34 = vector.multi_reduction <add>, %33, %cst_16 [0] : vector<1x8x128xf32> to vector<8x128xf32>
      %35 = arith.addf %32, %34 : vector<8x128xf32>
      %c0_17 = arith.constant 0 : index
      %c0_18 = arith.constant 0 : index
      %36 = vector.load %arg5[%c0_17, %c0_18] : memref<8x128xf32, #tpu.memory_space<vmem>>, vector<8x128xf32>
      tpu.vector_store %arg5[%c0_17, %c0_18], %35 {strides = array<i32>} : memref<8x128xf32, #tpu.memory_space<vmem>>, vector<8x128xf32>,
    } else {
    }
    %c0_i32_12 = arith.constant 0 : i32
    %29 = arith.cmpi sge, %25, %c0_i32_12 : i32
    %30 = arith.extui %29 : i1 to i32
    %c0_i32_13 = arith.constant 0 : i32
    %31 = arith.cmpi ne, %30, %c0_i32_13 : i32
    scf.if %31 {
      %32 = tpu.iota {dimensions = array<i32: 0>} : vector<8x128xi32>
      %c8_i32 = arith.constant 8 : i32
      %33 = arith.muli %25, %c8_i32 : i32
      %34 = vector.broadcast %33 : i32 to vector<8x128xi32>
      %35 = arith.addi %32, %34 : vector<8x128xi32>
      %36 = tpu.iota {dimensions = array<i32: 1>} : vector<8x128xi32>
      %c128_i32 = arith.constant 128 : i32
      %37 = vector.broadcast %c128_i32 : i32 to vector<8x128xi32>
      %38 = arith.muli %35, %37 : vector<8x128xi32>
      %39 = arith.addi %38, %36 : vector<8x128xi32>
      %c512_i32 = arith.constant 512 : i32
      %40 = vector.broadcast %c512_i32 : i32 to vector<8x128xi32>
      %41 = arith.cmpi slt, %39, %40 : vector<8x128xi32>
      %cst_14 = arith.constant 0.000000e+00 : f32
      %42 = vector.broadcast %cst_14 : f32 to vector<8x128xf32>
      %43 = arith.select %41, %23, %42 : vector<8x128xi1>, vector<8x128xf32>
      %c0_15 = arith.constant 0 : index
      %c0_16 = arith.constant 0 : index
      %44 = vector.load %arg5[%c0_15, %c0_16] : memref<8x128xf32, #tpu.memory_space<vmem>>, vector<8x128xf32>
      %45 = vector.shape_cast %43 : vector<8x128xf32> to vector<1x8x128xf32>
      %cst_17 = arith.constant dense<0.000000e+00> : vector<8x128xf32>
      %46 = vector.multi_reduction <add>, %45, %cst_17 [0] : vector<1x8x128xf32> to vector<8x128xf32>
      %47 = arith.addf %44, %46 : vector<8x128xf32>
      %c0_18 = arith.constant 0 : index
      %c0_19 = arith.constant 0 : index
      %48 = vector.load %arg5[%c0_18, %c0_19] : memref<8x128xf32, #tpu.memory_space<vmem>>, vector<8x128xf32>
      tpu.vector_store %arg5[%c0_18, %c0_19], %47 {strides = array<i32>} : memref<8x128xf32, #tpu.memory_space<vmem>>, vector<8x128xf32>,
    } else {
    }
    return
  }
  func.func @transform_0(%arg0: i32, %arg1: i32) -> (i32, i32) {
    %c1_i32 = arith.constant 1 : i32
    %0 = arith.muli %arg0, %c1_i32 : i32
    %1 = arith.addi %0, %arg1 : i32
    %c0_i32 = arith.constant 0 : i32
    %c0_i32_0 = arith.constant 0 : i32
    return %1, %c0_i32 : i32, i32
  }
  func.func @transform_1(%arg0: i32, %arg1: i32) -> (i32, i32) {
    %c1_i32 = arith.constant 1 : i32
    %0 = arith.muli %arg0, %c1_i32 : i32
    %1 = arith.addi %0, %arg1 : i32
    %c0_i32 = arith.constant 0 : i32
    %c0_i32_0 = arith.constant 0 : i32
    return %1, %c0_i32 : i32, i32
  }
  func.func @transform_2(%arg0: i32, %arg1: i32) -> (i32, i32) {
    %c1_i32 = arith.constant 1 : i32
    %0 = arith.muli %arg0, %c1_i32 : i32
    %1 = arith.addi %0, %arg1 : i32
    %c0_i32 = arith.constant 0 : i32
    %c0_i32_0 = arith.constant 0 : i32
    return %1, %c0_i32 : i32, i32
  }
  func.func @transform_3(%arg0: i32, %arg1: i32) -> (i32, i32) {
    %c0_i32 = arith.constant 0 : i32
    %c0_i32_0 = arith.constant 0 : i32
    return %arg0, %c0_i32 : i32, i32
  }
}

</mosaic_0001>

<llo_original>
// kernel: tpu_custom_call.1
$region0: #{tpu_custom_call.1}
  #allocation0 [shape = 'u32[]', space=smem, size = 0x4, offset = 0x4, fixed_abs, tag = 'smem constant byte address 0x4 - core index']
  #allocation1 [shape = 'u32[144,128]{1,0:T(1,128)}', space=vmem, size = 0x12000, scoped, tag = 'internal scratch']
  %s0 = inlined_call_operand.hbm [shape: f32[16,128], index: 0, kind: input, shape index: {}]
  %s1 = inlined_call_operand.hbm [shape: f32[16,128], index: 1, kind: input, shape index: {}]
  %s2 = inlined_call_operand.hbm [shape: f32[16,128], index: 2, kind: input, shape index: {}]
  %s3 = inlined_call_operand.hbm [shape: f32[16,128], index: 3, kind: output, shape index: {}]
  %s4 = sld [smem:[#allocation0]]
  $region69: #{tpu_custom_call.1} parent=0
    _
  %s6 = ssub.s32 1, %s4
  %s7 = scalar_select 0, %s6, %s4
  $region1: #{tpu_custom_call.1} parent=0
    #allocation2 [shape = 'u8[8192]{0}', space=vmem, size = 0x2000, scoped, tag = 'input window, operand 0']
    #allocation3 [shape = 's32[2]{0}', space=sflag, size = 0x8, scoped, tag = 'scoped memory for tpu_custom_call.1']
    #allocation4 [shape = 's32[2]{0}', space=sflag, size = 0x8, scoped, tag = 'scoped memory for tpu_custom_call.1']
    #allocation5 [shape = 'u8[8192]{0}', space=vmem, size = 0x2000, scoped, tag = 'input window, operand 1']
    #allocation6 [shape = 's32[2]{0}', space=sflag, size = 0x8, scoped, tag = 'scoped memory for tpu_custom_call.1']
    #allocation7 [shape = 'u8[8192]{0}', space=vmem, size = 0x2000, scoped, tag = 'input window, operand 2']
    #allocation8 [shape = 'u8[8192]{0}', space=vmem, size = 0x2000, scoped, tag = 'output window, operand 0']
    %8 = vsyncpa [#allocation3], 0
    %s9 = scalar_lea.sflag [#allocation3], 1
    %10 = vsyncpa %s9, 0
    %11 = vsyncpa [#allocation6], 0
    %s12 = scalar_lea.sflag [#allocation6], 1
    %13 = vsyncpa %s12, 0
    %14 = vsyncpa [#allocation4], 0
    %s15 = scalar_lea.sflag [#allocation4], 1
    %16 = vsyncpa %s15, 0
    loop: start=0, step=1, limit=4
    $region2: #{tpu_custom_call.1} parent=1 // loop_pre_header
      _
    $region3: #{tpu_custom_call.1} parent=1 // loop_header
      %s18 = sphi 0, %s22
      %p19 = scmp.ge.s32.totalorder %s18, 4
      %s25 = sphi 0, %s37
      %s26 = sphi 0, %s33
      %s27 = sphi 0, %s25
      %s28 = sphi 0, %s26
      %s29 = sphi 0, %s27
      %s30 = sphi 0, %s28
      %s42 = sphi 0, %s44
      %s45 = sphi 0, %s42
      %s46 = sphi 0, %s45
      %s62 = sphi 0, %s46
      %s70 = sphi 0, %s72
      %s73 = sphi 0, %s70
      %s74 = sphi 0, %s73
      %s90 = sphi 0, %s74
      %s98 = sphi 0, %s100
      %s101 = sphi 0, %s98
      %s102 = sphi 0, %s101
      %s118 = sphi 0, %s102
      %s124 = sphi 0, %s126
      %s127 = sphi 0, %s124
      %s128 = sphi 0, %s127
      %s144 = sphi 0, %s128
    $region4: #{tpu_custom_call.1} parent=1 // loop_header_branch
      %21 = sbr.rel (%p19) target = $region8
    $region5: #{tpu_custom_call.1} parent=1 // loop_body
      %s23 = ssub.s32 %s18, 1
      %s24 = ssub.s32 %s18, 2
      %s31 = sadd.s32 1, %s26
      %p32 = scmp.ge.s32.totalorder %s31, 1
      %s33 = scalar_select %p32, 0, %s31
      %s34 = sadd.s32 1, %s25
      %s35 = scalar_select %p32, %s34, %s25
      %p36 = scmp.ge.s32.totalorder %s35, 2
      %s37 = scalar_select %p36, 0, %s35
      %s38 = sadd.s32 %s25, %s26
      %s39 = sadd.s32 %s37, %s33
      %s40 = ssub.s32 %s38, %s39
      %p41 = scmp.eq.s32.totalorder %s40, 0
      %s43 = sadd.s32 %s42, 1
      %s44 = scalar_select %p41, %s42, %s43
      %p47 = pneg %p41
      %p48 = scmp.eq.s32.totalorder %s18, 1
      %p49 = por %p47, %p48
      %p50 = scmp.ne.s32.totalorder %s42, %s45
      %p51 = scmp.eq.s32.totalorder %s18, 0
      %p52 = por %p50, %p51
      %p53 = scmp.ne.s32.totalorder %s42, %s45
      %p54 = scmp.eq.s32.totalorder %s23, 1
      %p55 = por %p53, %p54
      %p56 = scmp.ne.s32.totalorder %s45, %s46
      %p57 = scmp.eq.s32.totalorder %s23, 0
      %p58 = por %p56, %p57
      %p59 = scmp.ne.s32.totalorder %s45, %s46
      %p60 = scmp.eq.s32.totalorder %s24, 1
      %p61 = por %p59, %p60
      %p63 = scmp.ne.s32.totalorder %s46, %s62
      %p64 = scmp.eq.s32.totalorder %s24, 0
      %p65 = por %p63, %p64
      %s66 = sadd.s32 %s25, %s26
      %s67 = sadd.s32 %s37, %s33
      %s68 = ssub.s32 %s66, %s67
      %p69 = scmp.eq.s32.totalorder %s68, 0
      %s71 = sadd.s32 %s70, 1
      %s72 = scalar_select %p69, %s70, %s71
      %p75 = pneg %p69
      %p76 = scmp.eq.s32.totalorder %s18, 1
      %p77 = por %p75, %p76
      %p78 = scmp.ne.s32.totalorder %s70, %s73
      %p79 = scmp.eq.s32.totalorder %s18, 0
      %p80 = por %p78, %p79
      %p81 = scmp.ne.s32.totalorder %s70, %s73
      %p82 = scmp.eq.s32.totalorder %s23, 1
      %p83 = por %p81, %p82
      %p84 = scmp.ne.s32.totalorder %s73, %s74
      %p85 = scmp.eq.s32.totalorder %s23, 0
      %p86 = por %p84, %p85
      %p87 = scmp.ne.s32.totalorder %s73, %s74
      %p88 = scmp.eq.s32.totalorder %s24, 1
      %p89 = por %p87, %p88
      %p91 = scmp.ne.s32.totalorder %s74, %s90
      %p92 = scmp.eq.s32.totalorder %s24, 0
      %p93 = por %p91, %p92
      %s94 = sadd.s32 %s25, %s26
      %s95 = sadd.s32 %s37, %s33
      %s96 = ssub.s32 %s94, %s95
      %p97 = scmp.eq.s32.totalorder %s96, 0
      %s99 = sadd.s32 %s98, 1
      %s100 = scalar_select %p97, %s98, %s99
      %p103 = pneg %p97
      %p104 = scmp.eq.s32.totalorder %s18, 1
      %p105 = por %p103, %p104
      %p106 = scmp.ne.s32.totalorder %s98, %s101
      %p107 = scmp.eq.s32.totalorder %s18, 0
      %p108 = por %p106, %p107
      %p109 = scmp.ne.s32.totalorder %s98, %s101
      %p110 = scmp.eq.s32.totalorder %s23, 1
      %p111 = por %p109, %p110
      %p112 = scmp.ne.s32.totalorder %s101, %s102
      %p113 = scmp.eq.s32.totalorder %s23, 0
      %p114 = por %p112, %p113
      %p115 = scmp.ne.s32.totalorder %s101, %s102
      %p116 = scmp.eq.s32.totalorder %s24, 1
      %p117 = por %p115, %p116
      %p119 = scmp.ne.s32.totalorder %s102, %s118
      %p120 = scmp.eq.s32.totalorder %s24, 0
      %p121 = por %p119, %p120
      %s122 = ssub.s32 %s25, %s37
      %p123 = scmp.eq.s32.totalorder %s122, 0
      %s125 = sadd.s32 %s124, 1
      %s126 = scalar_select %p123, %s124, %s125
      %p129 = pneg %p123
      %p130 = scmp.eq.s32.totalorder %s18, 1
      %p131 = por %p129, %p130
      %p132 = scmp.ne.s32.totalorder %s124, %s127
      %p133 = scmp.eq.s32.totalorder %s18, 0
      %p134 = por %p132, %p133
      %p135 = scmp.ne.s32.totalorder %s124, %s127
      %p136 = scmp.eq.s32.totalorder %s23, 1
      %p137 = por %p135, %p136
      %p138 = scmp.ne.s32.totalorder %s127, %s128
      %p139 = scmp.eq.s32.totalorder %s23, 0
      %p140 = por %p138, %p139
      %p141 = scmp.ne.s32.totalorder %s127, %s128
      %p142 = scmp.eq.s32.totalorder %s24, 1
      %p143 = por %p141, %p142
      %p145 = scmp.ne.s32.totalorder %s128, %s144
      %p146 = scmp.eq.s32.totalorder %s24, 0
      %p147 = por %p145, %p146
      %p148 = scmp.le.s32.totalorder 1, %s18
      %p149 = scmp.lt.s32.totalorder %s18, 3
      %p150 = pnand %p148, %p149
      %p151 = pneg %p150
      // Predicated region
      $region9: #{tpu_custom_call.1} parent=5 // pred_check
        _
      $region10: #{tpu_custom_call.1} parent=5 // pred_check_branch
        %153 = sbr.rel (%p150) target = $region12
      $region11: #{tpu_custom_call.1} parent=5 // pred_region
        %s154 = ssub.s32 %s18, 1
      $region12: #{tpu_custom_call.1} parent=5 // pred_fallthru
        _
      %p155 = scmp.lt.s32.totalorder %s18, 2
      // Predicated region
      $region13: #{tpu_custom_call.1} parent=5 // pred_check
        %p156 = pneg %p155
      $region14: #{tpu_custom_call.1} parent=5 // pred_check_branch
        %158 = sbr.rel (%p156) target = $region16
      $region15: #{tpu_custom_call.1} parent=5 // pred_region
        // Predicated region
        $region17: #{tpu_custom_call.1} parent=15 // pred_check
          %p159 = pneg %p52
        $region18: #{tpu_custom_call.1} parent=15 // pred_check_branch
          %161 = sbr.rel (%p159) target = $region20
        $region19: #{tpu_custom_call.1} parent=15 // pred_region
          %s162 = sand.u32 %s42, 1
          %s163 = scalar_lea.sflag [#allocation3], %s162
          %s164 = sand.u32 %s42, 1
          %s165 = smul.addr %s164, 8
          %s166 = scalar_lea.vmem [#allocation2], %s165
          %s167 = sadd.s32 %s25, %s26
          %s169 = ssub.s32 128, 128
          %170 = vsyncadd %s163, %s169
          %s171 = smul.addr %s167, 128
          %s172 = scalar_lea.hbm %s0, %s171
          %s174 = sshll.u32 %s166, 4
          %s175 = int_to_ptr.vmem [resolvable:$true] %s174
          %177 = dma.hbm_to_vmem [thread:$0]  %s172, 128, %s175, %s163
        $region20: #{tpu_custom_call.1} parent=15 // pred_fallthru
          _
        // Predicated region
        $region21: #{tpu_custom_call.1} parent=15 // pred_check
          %p178 = pneg %p80
        $region22: #{tpu_custom_call.1} parent=15 // pred_check_branch
          %180 = sbr.rel (%p178) target = $region24
        $region23: #{tpu_custom_call.1} parent=15 // pred_region
          %s181 = sand.u32 %s18, 1
          %s182 = scalar_lea.sflag [#allocation6], %s181
          %s183 = sand.u32 %s70, 1
          %s184 = smul.addr %s183, 8
          %s185 = scalar_lea.vmem [#allocation5], %s184
          %s186 = sadd.s32 %s25, %s26
          %s188 = ssub.s32 128, 128
          %189 = vsyncadd %s182, %s188
          %s190 = smul.addr %s186, 128
          %s191 = scalar_lea.hbm %s1, %s190
          %s193 = sshll.u32 %s185, 4
          %s194 = int_to_ptr.vmem [resolvable:$true] %s193
          %196 = dma.hbm_to_vmem [thread:$0]  %s191, 128, %s194, %s182
        $region24: #{tpu_custom_call.1} parent=15 // pred_fallthru
          _
        // Predicated region
        $region25: #{tpu_custom_call.1} parent=15 // pred_check
          %p197 = pneg %p108
        $region26: #{tpu_custom_call.1} parent=15 // pred_check_branch
          %199 = sbr.rel (%p197) target = $region28
        $region27: #{tpu_custom_call.1} parent=15 // pred_region
          %s200 = sand.u32 %s18, 1
          %s201 = scalar_lea.sflag [#allocation6], %s200
          %s202 = sand.u32 %s98, 1
          %s203 = smul.addr %s202, 8
          %s204 = scalar_lea.vmem [#allocation7], %s203
          %s205 = sadd.s32 %s25, %s26
          %s207 = ssub.s32 128, 128
          %208 = vsyncadd %s201, %s207
          %s209 = smul.addr %s205, 128
          %s210 = scalar_lea.hbm %s2, %s209
          %s212 = sshll.u32 %s204, 4
          %s213 = int_to_ptr.vmem [resolvable:$true] %s212
          %215 = dma.hbm_to_vmem [thread:$0]  %s210, 128, %s213, %s201
        $region28: #{tpu_custom_call.1} parent=15 // pred_fallthru
          _
      $region16: #{tpu_custom_call.1} parent=5 // pred_fallthru
        _
      %p216 = scmp.le.s32.totalorder 1, %s18
      %p217 = scmp.lt.s32.totalorder %s18, 3
      %p218 = pnand %p216, %p217
      %p219 = pneg %p218
      // Predicated region
      $region29: #{tpu_custom_call.1} parent=5 // pred_check
        _
      $region30: #{tpu_custom_call.1} parent=5 // pred_check_branch
        %221 = sbr.rel (%p218) target = $region32
      $region31: #{tpu_custom_call.1} parent=5 // pred_region
        %s222 = ssub.s32 %s18, 1
        %s223 = sand.u32 %s45, 1
        %s224 = scalar_lea.sflag [#allocation3], %s223
        %s225 = sand.u32 %s45, 1
        %s226 = smul.addr %s225, 8
        %s227 = scalar_lea.vmem [#allocation2], %s226
        // Predicated region
        $region33: #{tpu_custom_call.1} parent=31 // pred_check
          %p228 = pneg %p58
        $region34: #{tpu_custom_call.1} parent=31 // pred_check_branch
          %230 = sbr.rel (%p228) target = $region36
        $region35: #{tpu_custom_call.1} parent=31 // pred_region
          %231 = dma.done %s224, 128
        $region36: #{tpu_custom_call.1} parent=31 // pred_fallthru
          _
        %s232 = sand.u32 %s23, 1
        %s233 = scalar_lea.sflag [#allocation6], %s232
        %s234 = sand.u32 %s73, 1
        %s235 = smul.addr %s234, 8
        %s236 = scalar_lea.vmem [#allocation5], %s235
        // Predicated region
        $region37: #{tpu_custom_call.1} parent=31 // pred_check
          %p237 = pneg %p86
        $region38: #{tpu_custom_call.1} parent=31 // pred_check_branch
          %239 = sbr.rel (%p237) target = $region40
        $region39: #{tpu_custom_call.1} parent=31 // pred_region
          %240 = dma.done %s233, 128
        $region40: #{tpu_custom_call.1} parent=31 // pred_fallthru
          _
        %s241 = sand.u32 %s23, 1
        %s242 = scalar_lea.sflag [#allocation6], %s241
        %s243 = sand.u32 %s101, 1
        %s244 = smul.addr %s243, 8
        %s245 = scalar_lea.vmem [#allocation7], %s244
        // Predicated region
        $region41: #{tpu_custom_call.1} parent=31 // pred_check
          %p246 = pneg %p114
        $region42: #{tpu_custom_call.1} parent=31 // pred_check_branch
          %248 = sbr.rel (%p246) target = $region44
        $region43: #{tpu_custom_call.1} parent=31 // pred_region
          %249 = dma.done %s242, 128
        $region44: #{tpu_custom_call.1} parent=31 // pred_fallthru
          _
        %s250 = sand.u32 %s45, 1
        %s251 = scalar_lea.sflag [#allocation3], %s250
        %s252 = sand.u32 %s45, 1
        %s253 = smul.addr %s252, 8
        %s254 = scalar_lea.vmem [#allocation2], %s253
        %p255 = pneg %p58
        %p256 = pneg %p55
        %s257 = sand.u32 %s23, 1
        %s258 = scalar_lea.sflag [#allocation6], %s257
        %s259 = sand.u32 %s73, 1
        %s260 = smul.addr %s259, 8
        %s261 = scalar_lea.vmem [#allocation5], %s260
        %p262 = pneg %p86
        %p263 = pneg %p83
        %s264 = sand.u32 %s23, 1
        %s265 = scalar_lea.sflag [#allocation6], %s264
        %s266 = sand.u32 %s101, 1
        %s267 = smul.addr %s266, 8
        %s268 = scalar_lea.vmem [#allocation7], %s267
        %p269 = pneg %p114
        %p270 = pneg %p111
        %p271 = pneg %p140
        %p272 = pneg %p137
        %s273 = sand.u32 %s127, 1
        %s274 = scalar_lea.sflag [#allocation4], %s273
        %s275 = sand.u32 %s127, 1
        %s276 = smul.addr %s275, 8
        %s277 = scalar_lea.vmem [#allocation8], %s276
        %s278 = sadd.s32 %s27, %s28
        %s279 = sadd.s32 %s27, %s28
        %s280 = sadd.s32 %s27, %s28
        %p281 = scmp.eq.s32.totalorder %s28, 0
        // Predicated region
        $region45: #{tpu_custom_call.1} parent=31 // pred_check
          %p282 = pneg %p281
        $region46: #{tpu_custom_call.1} parent=31 // pred_check_branch
          %284 = sbr.rel (%p282) target = $region48
        $region47: #{tpu_custom_call.1} parent=31 // pred_region
          %285 = vst [vmem:[%s277] sm:$0xff] 0.0
        $region48: #{tpu_custom_call.1} parent=31 // pred_fallthru
          _
        %v286 = vld [vmem:[%s227] sm:$0xff]
        %v287 = vld [vmem:[%s236] sm:$0xff]
        %v288 = vld [vmem:[%s245] sm:$0xff]
        %v289 = vmul.f32 %v286, 9.99
        %v290 = vadd.f32 %v289, 0.01
        %v291 = vrcp.pop %v290
        %v292 = vsub.f32 %v291, %v287
        %v293 = vand.u32 2147483647, %v292
        %v294 = vsub.f32 %v288, 1.0
        %v295 = vsub.f32 0.0, %v293
        %v296 = vmul.f32 %v295, 1.442695
        %v297 = vpow.pop %v296
        %v298 = vadd.f32 %v294, %v297
        %v299 = vand.u32 2147483647, %v298
        %v300 = vsub.f32 1.0, %v288
        %v301 = vmul.f32 %v293, %v300
        %v302 = vadd.f32 %v299, %v301
        %s303 = sadd.s32 %s27, %s28
        %p304 = scmp.lt.s32.totalorder %s303, 0
        // Predicated region
        $region49: #{tpu_custom_call.1} parent=31 // pred_check
          %p305 = pneg %p304
        $region50: #{tpu_custom_call.1} parent=31 // pred_check_branch
          %307 = sbr.rel (%p305) target = $region52
        $region51: #{tpu_custom_call.1} parent=31 // pred_region
          %v308 = vld [vmem:[%s277] sm:$0xff]
          %v309 = vadd.f32 %v302, 0.0
          %v310 = vadd.f32 %v308, %v309
          %311 = vst [vmem:[%s277] sm:$0xff] %v310
        $region52: #{tpu_custom_call.1} parent=31 // pred_fallthru
          _
        %p312 = scmp.ge.s32.totalorder %s303, 0
        // Predicated region
        $region53: #{tpu_custom_call.1} parent=31 // pred_check
          %p313 = pneg %p312
        $region54: #{tpu_custom_call.1} parent=31 // pred_check_branch
          %315 = sbr.rel (%p313) target = $region56
        $region55: #{tpu_custom_call.1} parent=31 // pred_region
          %v316 = vlaneseq
          %v317 = vshrl.u32 %v316, 7
          %s318 = smul.u32 %s303, 8
          %v319 = vstv %s318
          %v320 = vadd.s32 %v317, %v319
          %v321 = vlaneseq
          %v322 = vand.u32 %v321, 127
          %v323 = vmul.u32 %v320, 128
          %v324 = vadd.s32 %v323, %v322
          %vm325 = vcmp.lt.s32.totalorder %v324, 512
          %v326 = vsel %vm325, %v302, 0.0
          %v327 = vld [vmem:[%s277] sm:$0xff]
          %v328 = vadd.f32 %v326, 0.0
          %v329 = vadd.f32 %v327, %v328
          %330 = vst [vmem:[%s277] sm:$0xff] %v329
        $region56: #{tpu_custom_call.1} parent=31 // pred_fallthru
          _
        %s331 = sand.u32 %s127, 1
        %s332 = scalar_lea.sflag [#allocation4], %s331
        %s333 = sand.u32 %s127, 1
        %s334 = smul.addr %s333, 8
        %s335 = scalar_lea.vmem [#allocation8], %s334
        // Predicated region
        $region57: #{tpu_custom_call.1} parent=31 // pred_check
          %p336 = pneg %p137
        $region58: #{tpu_custom_call.1} parent=31 // pred_check_branch
          %338 = sbr.rel (%p336) target = $region60
        $region59: #{tpu_custom_call.1} parent=31 // pred_region
          %s340 = ssub.s32 128, 128
          %341 = vsyncadd %s332, %s340
          %s342 = smul.addr %s27, 128
          %s343 = scalar_lea.hbm %s3, %s342
          %s345 = sshll.u32 %s335, 4
          %s346 = int_to_ptr.vmem [resolvable:$true] %s345
          %348 = dma.vmem_to_hbm [thread:$0]  %s346, 128, %s343, %s332
        $region60: #{tpu_custom_call.1} parent=31 // pred_fallthru
          _
      $region32: #{tpu_custom_call.1} parent=5 // pred_fallthru
        _
      %p349 = scmp.le.s32.totalorder 2, %s18
      // Predicated region
      $region61: #{tpu_custom_call.1} parent=5 // pred_check
        %p350 = pneg %p349
      $region62: #{tpu_custom_call.1} parent=5 // pred_check_branch
        %352 = sbr.rel (%p350) target = $region64
      $region63: #{tpu_custom_call.1} parent=5 // pred_region
        %s353 = ssub.s32 %s18, 2
        // Predicated region
        $region65: #{tpu_custom_call.1} parent=63 // pred_check
          %p354 = pneg %p143
        $region66: #{tpu_custom_call.1} parent=63 // pred_check_branch
          %356 = sbr.rel (%p354) target = $region68
        $region67: #{tpu_custom_call.1} parent=63 // pred_region
          %s357 = sand.u32 %s128, 1
          %s358 = scalar_lea.sflag [#allocation4], %s357
          %s359 = sand.u32 %s128, 1
          %s360 = smul.addr %s359, 8
          %s361 = scalar_lea.vmem [#allocation8], %s360
          %362 = dma.done %s358, 128
        $region68: #{tpu_custom_call.1} parent=63 // pred_fallthru
          _
      $region64: #{tpu_custom_call.1} parent=5 // pred_fallthru
        _
    $region6: #{tpu_custom_call.1} parent=1 // loop_footer
      %s22 = sadd.s32 1, %s18
    $region7: #{tpu_custom_call.1} parent=1 // loop_footer_branch
      %17 = sbr.rel target = $region3
    $region8: #{tpu_custom_call.1} parent=1 // loop_exit
      _
    %363 = vsyncpa [#allocation3], 1
    %s364 = scalar_lea.sflag [#allocation3], 1
    %365 = vsyncpa %s364, 1
    %366 = vsyncpa [#allocation6], 1
    %s367 = scalar_lea.sflag [#allocation6], 1
    %368 = vsyncpa %s367, 1
    %369 = vsyncpa [#allocation4], 1
    %s370 = scalar_lea.sflag [#allocation4], 1
    %371 = vsyncpa %s370, 1

</llo_original>
